<compile_context>
chip_gen: v7x
topology: tpu7x:2x2x1
jax: 0.10.0
libtpu: 0.0.40
codegen_flags: <defaults>
</compile_context>

<pallas_src>
import functools

import jax
import jax.numpy as jnp
from jax.experimental import pallas as pl
from jax.experimental.pallas import tpu as pltpu


def linear_kernel(w_ref, b_ref, x_ref, o_ref):
    """VPU linear layer (y = W @ x + b, batch on the lane axis).

    w_ref: (out_f, in_f) f32 scalars in SMEM (PyTorch weight layout).
    b_ref: (out_f,)      f32 scalars in SMEM.
    x_ref: (in_f, TB)    f32 in VMEM.
    o_ref: (out_f, TB)   f32 in VMEM.
    """
    out_f, in_f = w_ref.shape
    # Load each input-feature row once; in_f == 3, out_f == 2 -> fully unrolled.
    rows = [x_ref[k:k + 1, :] for k in range(in_f)]
    for j in range(out_f):
        acc = rows[0] * w_ref[j, 0]
        for k in range(1, in_f):
            acc = acc + rows[k] * w_ref[j, k]
        o_ref[j:j + 1, :] = acc + b_ref[j]


@functools.partial(jax.jit, static_argnames=("tile_b",))
def mnist_logistic_forward(x, weight, bias, *, tile_b=1024):
    """x: (B, 3) f32; weight: (2, 3) f32 (PyTorch layout); bias: (2,) f32."""
    B, in_f = x.shape
    out_f = weight.shape[0]
    x_t = x.T                                    # (in_f, B): lane-dense batch

    smem = pltpu.MemorySpace.SMEM
    vmem = pltpu.MemorySpace.VMEM

    if B <= tile_b:
        # Single block: gridless call, no grid/pipelining machinery at all.
        y_t = pl.pallas_call(
            linear_kernel,
            out_shape=jax.ShapeDtypeStruct((out_f, B), x.dtype),
            in_specs=[
                pl.BlockSpec(memory_space=smem),   # weight (resident scalars)
                pl.BlockSpec(memory_space=smem),   # bias   (resident scalars)
                pl.BlockSpec(memory_space=vmem),   # activations
            ],
            out_specs=pl.BlockSpec(memory_space=vmem),
        )(weight, bias, x_t)
        return y_t.T

    # Batch-tiled path for large B: pad the lane axis to a tile multiple.
    num_blocks = pl.cdiv(B, tile_b)
    b_pad = num_blocks * tile_b
    if b_pad != B:
        x_t = jnp.pad(x_t, ((0, 0), (0, b_pad - B)))

    y_t = pl.pallas_call(
        linear_kernel,
        out_shape=jax.ShapeDtypeStruct((out_f, b_pad), x.dtype),
        grid=(num_blocks,),
        in_specs=[
            pl.BlockSpec(memory_space=smem),               # weight, resident
            pl.BlockSpec(memory_space=smem),               # bias, resident
            pl.BlockSpec((in_f, tile_b), lambda i: (0, i)),
        ],
        out_specs=pl.BlockSpec((out_f, tile_b), lambda i: (0, i)),
        compiler_params=pltpu.CompilerParams(
            dimension_semantics=("parallel",)),            # shards on v7x 2xTC
    )(weight, bias, x_t)
    return y_t[:, :B].T


if __name__ == "__main__":
    key = jax.random.PRNGKey(0)
    kx, kw, kb = jax.random.split(key, 3)

    # Module shapes: nn.Linear(3, 2) -> weight (2, 3), bias (2,)
    B, IN_F, OUT_F = 8, 3, 2
    x = jax.random.normal(kx, (B, IN_F), dtype=jnp.float32)
    weight = jax.random.normal(kw, (OUT_F, IN_F), dtype=jnp.float32) * 0.1
    bias = jax.random.normal(kb, (OUT_F,), dtype=jnp.float32) * 0.1

    # Small-batch (gridless) path.
    y = mnist_logistic_forward(x, weight, bias)
    jax.block_until_ready(y)
    y_ref = x @ weight.T + bias
    assert y.shape == (B, OUT_F)
    assert jnp.allclose(y, y_ref, atol=1e-5, rtol=1e-5)

    # Batch-tiled (grid) path, exercised at a still-small size with padding.
    B2 = 200
    x2 = jax.random.normal(kx, (B2, IN_F), dtype=jnp.float32)
    y2 = mnist_logistic_forward(x2, weight, bias, tile_b=128)
    jax.block_until_ready(y2)
    y2_ref = x2 @ weight.T + bias
    assert y2.shape == (B2, OUT_F)
    assert jnp.allclose(y2, y2_ref, atol=1e-5, rtol=1e-5)

    print("KERNEL_OK")
</pallas_src>

<mosaic_0001>
module attributes {stable_mosaic.version = 11 : i64} {
  func.func @linear_kernel(%arg0: memref<2x3xf32, #tpu.memory_space<smem>>, %arg1: memref<2xf32, #tpu.memory_space<smem>>, %arg2: memref<3x8xf32, #tpu.memory_space<vmem>>, %arg3: memref<2x8xf32, #tpu.memory_space<vmem>>) attributes {dimension_semantics = [], scalar_prefetch = 0 : i64, scratch_operands = 0 : i64, tpu.core_type = #tpu.core_type<tc>} {
    %c0 = arith.constant 0 : index
    %c0_0 = arith.constant 0 : index
    %0 = vector.load %arg2[%c0, %c0_0] : memref<3x8xf32, #tpu.memory_space<vmem>>, vector<1x8xf32>
    %c1 = arith.constant 1 : index
    %c0_1 = arith.constant 0 : index
    %1 = vector.load %arg2[%c1, %c0_1] : memref<3x8xf32, #tpu.memory_space<vmem>>, vector<1x8xf32>
    %c2 = arith.constant 2 : index
    %c0_2 = arith.constant 0 : index
    %2 = vector.load %arg2[%c2, %c0_2] : memref<3x8xf32, #tpu.memory_space<vmem>>, vector<1x8xf32>
    %c0_3 = arith.constant 0 : index
    %c0_4 = arith.constant 0 : index
    %3 = memref.load %arg0[%c0_3, %c0_4] : memref<2x3xf32, #tpu.memory_space<smem>>
    %4 = vector.broadcast %3 : f32 to vector<1x8xf32>
    %5 = arith.mulf %0, %4 : vector<1x8xf32>
    %c0_5 = arith.constant 0 : index
    %c1_6 = arith.constant 1 : index
    %6 = memref.load %arg0[%c0_5, %c1_6] : memref<2x3xf32, #tpu.memory_space<smem>>
    %7 = vector.broadcast %6 : f32 to vector<1x8xf32>
    %8 = arith.mulf %1, %7 : vector<1x8xf32>
    %9 = arith.addf %5, %8 : vector<1x8xf32>
    %c0_7 = arith.constant 0 : index
    %c2_8 = arith.constant 2 : index
    %10 = memref.load %arg0[%c0_7, %c2_8] : memref<2x3xf32, #tpu.memory_space<smem>>
    %11 = vector.broadcast %10 : f32 to vector<1x8xf32>
    %12 = arith.mulf %2, %11 : vector<1x8xf32>
    %13 = arith.addf %9, %12 : vector<1x8xf32>
    %c0_9 = arith.constant 0 : index
    %14 = memref.load %arg1[%c0_9] : memref<2xf32, #tpu.memory_space<smem>>
    %15 = vector.broadcast %14 : f32 to vector<1x8xf32>
    %16 = arith.addf %13, %15 : vector<1x8xf32>
    %c0_10 = arith.constant 0 : index
    %c0_11 = arith.constant 0 : index
    %17 = vector.load %arg3[%c0_10, %c0_11] : memref<2x8xf32, #tpu.memory_space<vmem>>, vector<1x8xf32>
    tpu.vector_store %arg3[%c0_10, %c0_11], %16 {strides = array<i32>} : memref<2x8xf32, #tpu.memory_space<vmem>>, vector<1x8xf32>,
    %c1_12 = arith.constant 1 : index
    %c0_13 = arith.constant 0 : index
    %18 = memref.load %arg0[%c1_12, %c0_13] : memref<2x3xf32, #tpu.memory_space<smem>>
    %19 = vector.broadcast %18 : f32 to vector<1x8xf32>
    %20 = arith.mulf %0, %19 : vector<1x8xf32>
    %c1_14 = arith.constant 1 : index
    %c1_15 = arith.constant 1 : index
    %21 = memref.load %arg0[%c1_14, %c1_15] : memref<2x3xf32, #tpu.memory_space<smem>>
    %22 = vector.broadcast %21 : f32 to vector<1x8xf32>
    %23 = arith.mulf %1, %22 : vector<1x8xf32>
    %24 = arith.addf %20, %23 : vector<1x8xf32>
    %c1_16 = arith.constant 1 : index
    %c2_17 = arith.constant 2 : index
    %25 = memref.load %arg0[%c1_16, %c2_17] : memref<2x3xf32, #tpu.memory_space<smem>>
    %26 = vector.broadcast %25 : f32 to vector<1x8xf32>
    %27 = arith.mulf %2, %26 : vector<1x8xf32>
    %28 = arith.addf %24, %27 : vector<1x8xf32>
    %c1_18 = arith.constant 1 : index
    %29 = memref.load %arg1[%c1_18] : memref<2xf32, #tpu.memory_space<smem>>
    %30 = vector.broadcast %29 : f32 to vector<1x8xf32>
    %31 = arith.addf %28, %30 : vector<1x8xf32>
    %c1_19 = arith.constant 1 : index
    %c0_20 = arith.constant 0 : index
    %32 = vector.load %arg3[%c1_19, %c0_20] : memref<2x8xf32, #tpu.memory_space<vmem>>, vector<1x8xf32>
    tpu.vector_store %arg3[%c1_19, %c0_20], %31 {strides = array<i32>} : memref<2x8xf32, #tpu.memory_space<vmem>>, vector<1x8xf32>,
    return
  }
}

</mosaic_0001>

<llo_original>
// kernel: mnist_logistic_forward.1
$region0: #{mnist_logistic_forward.1}
  #allocation0 [shape = 'u32[]', space=smem, size = 0x4, offset = 0x4, fixed_abs, tag = 'smem constant byte address 0x4 - core index']
  #allocation1 [shape = 'u32[144,128]{1,0:T(1,128)}', space=vmem, size = 0x12000, scoped, tag = 'internal scratch']
  %s0 = inlined_call_operand.vmem [shape: f32[2,3], index: 0, kind: input, shape index: {}]
  %s1 = inlined_call_operand.vmem [shape: f32[2], index: 1, kind: input, shape index: {}]
  %s2 = inlined_call_operand.hbm [shape: f32[3,8], index: 2, kind: input, shape index: {}]
  %s3 = inlined_call_operand.hbm [shape: f32[2,8], index: 3, kind: output, shape index: {}]
  %s4 = sld [smem:[#allocation0]]
  $region34: #{mnist_logistic_forward.1} parent=0
    _
  %s6 = ssub.s32 1, %s4
  %s7 = scalar_select 0, %s6, %s4
  $region1: #{mnist_logistic_forward.1} parent=0
    #allocation2 [shape = 'u8[1024]{0}', space=smem, size = 0x400, scoped, tag = 'input window, operand 0, single buffered']
    #allocation3 [shape = 's32[1]{0}', space=sflag, size = 0x4, scoped, tag = 'scoped memory for mnist_logistic_forward.1']
    #allocation4 [shape = 's32[1]{0}', space=sflag, size = 0x4, scoped, tag = 'scoped memory for mnist_logistic_forward.1']
    #allocation5 [shape = 's32[1]{0}', space=sflag, size = 0x4, scoped, tag = 'scoped memory for mnist_logistic_forward.1']
    #allocation6 [shape = 'u8[512]{0}', space=smem, size = 0x200, scoped, tag = 'input window, operand 1, single buffered']
    #allocation7 [shape = 's32[1]{0}', space=sflag, size = 0x4, scoped, tag = 'scoped memory for mnist_logistic_forward.1']
    #allocation8 [shape = 'u8[2048]{0}', space=vmem, size = 0x800, scoped, tag = 'input window, operand 2, single buffered']
    #allocation9 [shape = 'u8[1024]{0}', space=vmem, size = 0x400, scoped, tag = 'output window, operand 0, single buffered']
    %8 = vsyncpa [#allocation5], 0
    %9 = vsyncpa [#allocation7], 0
    %10 = vsyncpa [#allocation3], 0
    %11 = vsyncpa [#allocation4], 0
    // Predicated region
    $region2: #{mnist_logistic_forward.1} parent=1 // pred_check
      _
    $region3: #{mnist_logistic_forward.1} parent=1 // pred_check_branch
      %13 = sbr.rel (0) target = $region5
    $region4: #{mnist_logistic_forward.1} parent=1 // pred_region
      %s15 = ssub.s32 32, 32
      %16 = vsyncadd [#allocation5], %s15
      %s18 = sshll.u32 %s0, 4
      %s19 = int_to_ptr.vmem [resolvable:$true] %s18
      %21 = dma.vmem_to_smem %s19, 32, [#allocation2], [#allocation5]
    $region5: #{mnist_logistic_forward.1} parent=1 // pred_fallthru
      _
    // Predicated region
    $region6: #{mnist_logistic_forward.1} parent=1 // pred_check
      _
    $region7: #{mnist_logistic_forward.1} parent=1 // pred_check_branch
      %23 = sbr.rel (0) target = $region9
    $region8: #{mnist_logistic_forward.1} parent=1 // pred_region
      %s25 = ssub.s32 16, 16
      %26 = vsyncadd [#allocation7], %s25
      %s28 = sshll.u32 %s1, 4
      %s29 = int_to_ptr.vmem [resolvable:$true] %s28
      %31 = dma.vmem_to_smem %s29, 16, [#allocation6], [#allocation7]
    $region9: #{mnist_logistic_forward.1} parent=1 // pred_fallthru
      _
    // Predicated region
    $region10: #{mnist_logistic_forward.1} parent=1 // pred_check
      _
    $region11: #{mnist_logistic_forward.1} parent=1 // pred_check_branch
      %33 = sbr.rel (0) target = $region13
    $region12: #{mnist_logistic_forward.1} parent=1 // pred_region
      %s35 = ssub.s32 64, 64
      %36 = vsyncadd [#allocation3], %s35
      %s38 = sshll.u32 [#allocation8], 4
      %s39 = int_to_ptr.vmem [resolvable:$true] %s38
      %41 = dma.hbm_to_vmem [thread:$0]  %s2, 64, %s39, [#allocation3]
    $region13: #{mnist_logistic_forward.1} parent=1 // pred_fallthru
      _
    // Predicated region
    $region14: #{mnist_logistic_forward.1} parent=1 // pred_check
      _
    $region15: #{mnist_logistic_forward.1} parent=1 // pred_check_branch
      %43 = sbr.rel (0) target = $region17
    $region16: #{mnist_logistic_forward.1} parent=1 // pred_region
      %44 = dma.done [#allocation5], 32
    $region17: #{mnist_logistic_forward.1} parent=1 // pred_fallthru
      _
    // Predicated region
    $region18: #{mnist_logistic_forward.1} parent=1 // pred_check
      _
    $region19: #{mnist_logistic_forward.1} parent=1 // pred_check_branch
      %46 = sbr.rel (0) target = $region21
    $region20: #{mnist_logistic_forward.1} parent=1 // pred_region
      %47 = dma.done [#allocation7], 16
    $region21: #{mnist_logistic_forward.1} parent=1 // pred_fallthru
      _
    // Predicated region
    $region22: #{mnist_logistic_forward.1} parent=1 // pred_check
      _
    $region23: #{mnist_logistic_forward.1} parent=1 // pred_check_branch
      %49 = sbr.rel (0) target = $region25
    $region24: #{mnist_logistic_forward.1} parent=1 // pred_region
      %50 = dma.done [#allocation3], 64
    $region25: #{mnist_logistic_forward.1} parent=1 // pred_fallthru
      _
    %51 = sfence
    %v52 = vld [vmem:[#allocation8] sm:$0x1]
    %v53 = vld [vmem:[#allocation8 + $0x1] sm:$0x1]
    %v54 = vld [vmem:[#allocation8 + $0x2] sm:$0x1]
    %s55 = sld [smem:[#allocation2]]
    %v56 = vstv %s55
    %v57 = vmul.f32 %v52, %v56
    %s58 = sld [smem:[#allocation2 + $0x1]]
    %v59 = vstv %s58
    %v60 = vmul.f32 %v53, %v59
    %v61 = vadd.f32 %v57, %v60
    %s62 = sld [smem:[#allocation2 + $0x2]]
    %v63 = vstv %s62
    %v64 = vmul.f32 %v54, %v63
    %v65 = vadd.f32 %v61, %v64
    %s66 = sld [smem:[#allocation6]]
    %v67 = vstv %s66
    %v68 = vadd.f32 %v65, %v67
    %vm69 = vcmask 57344
    %70 = vst.msk [vmem:[#allocation9] sm:$0x1] %vm69, %v68
    %s71 = sld [smem:[#allocation2 + $0x80]]
    %v72 = vstv %s71
    %v73 = vmul.f32 %v52, %v72
    %s74 = sld [smem:[#allocation2 + $0x81]]
    %v75 = vstv %s74
    %v76 = vmul.f32 %v53, %v75
    %v77 = vadd.f32 %v73, %v76
    %s78 = sld [smem:[#allocation2 + $0x82]]
    %v79 = vstv %s78
    %v80 = vmul.f32 %v54, %v79
    %v81 = vadd.f32 %v77, %v80
    %s82 = sld [smem:[#allocation6 + $0x1]]
    %v83 = vstv %s82
    %v84 = vadd.f32 %v81, %v83
    %85 = vst.msk [vmem:[#allocation9 + $0x1] sm:$0x1] %vm69, %v84
    // Predicated region
    $region26: #{mnist_logistic_forward.1} parent=1 // pred_check
      _
    $region27: #{mnist_logistic_forward.1} parent=1 // pred_check_branch
      %87 = sbr.rel (0) target = $region29
    $region28: #{mnist_logistic_forward.1} parent=1 // pred_region
      %s89 = ssub.s32 32, 32
      %90 = vsyncadd [#allocation4], %s89
      %s92 = sshll.u32 [#allocation9], 4
      %s93 = int_to_ptr.vmem [resolvable:$true] %s92
      %95 = dma.vmem_to_hbm [thread:$0]  %s93, 32, %s3, [#allocation4]
    $region29: #{mnist_logistic_forward.1} parent=1 // pred_fallthru
      _
    // Predicated region
    $region30: #{mnist_logistic_forward.1} parent=1 // pred_check
      _
    $region31: #{mnist_logistic_forward.1} parent=1 // pred_check_branch
      %97 = sbr.rel (0) target = $region33
    $region32: #{mnist_logistic_forward.1} parent=1 // pred_region
      %98 = dma.done [#allocation4], 32
    $region33: #{mnist_logistic_forward.1} parent=1 // pred_fallthru
      _
    %99 = vsyncpa [#allocation3], 1
    %100 = vsyncpa [#allocation4], 1
    %101 = vsyncpa [#allocation5], 1
    %102 = vsyncpa [#allocation7], 1

</llo_original>
